<compile_context>
chip_gen: v7x
topology: tpu7x:2x2x1
jax: 0.10.0
libtpu: 0.0.40
codegen_flags: <defaults>
</compile_context>

<pallas_src>
import math
import functools

import jax
import jax.numpy as jnp
from jax import lax
from jax.experimental import pallas as pl
from jax.experimental.pallas import tpu as pltpu


def _round_up(x, m):
    return (x + m - 1) // m * m


def _matmul_bias_kernel(w_ref, p_ref, b_ref, o_ref):
    # w_ref: (Cout_pad, KC_pad)   scaled, flattened weight (rows: cout; cols: kh,kw,cin)
    # p_ref: (KC_pad, TL)         im2col patch tile, lanes = flattened (n, ho, wo)
    # b_ref: (Cout_pad, 1)        bias (f32)
    # o_ref: (Cout_pad, TL)       lane-dense output tile
    acc = jnp.dot(w_ref[...], p_ref[...], preferred_element_type=jnp.float32)
    o_ref[...] = (acc + b_ref[...]).astype(o_ref.dtype)


def _im2col_lane_major(x, K, stride, padding):
    """(N, Cin, H, W) -> (K*K*Cin, N*H_out*W_out).

    Contraction-row order: (kh, kw, cin).  Lane order: (n, ho, wo).
    All layout plumbing happens here in XLA, not inside the Pallas kernel.
    """
    N, Cin, H, W = x.shape
    H_out = (H + 2 * padding - K) // stride + 1
    W_out = (W + 2 * padding - K) // stride + 1
    xp = jnp.pad(x, ((0, 0), (0, 0), (padding, padding), (padding, padding)))
    taps = []
    for kh in range(K):
        for kw in range(K):
            tap = lax.slice(
                xp,
                (0, 0, kh, kw),
                (N, Cin, kh + (H_out - 1) * stride + 1, kw + (W_out - 1) * stride + 1),
                (1, 1, stride, stride),
            )  # (N, Cin, H_out, W_out)
            taps.append(tap)
    p = jnp.stack(taps, axis=0)                # (K*K, N, Cin, Ho, Wo)
    p = jnp.transpose(p, (0, 2, 1, 3, 4))      # (K*K, Cin, N, Ho, Wo)
    return p.reshape(K * K * Cin, N * H_out * W_out), H_out, W_out


def equal_conv2d(x_nchw, weight_oihw, bias=None, *, stride=1, padding=0, lane_tile=512):
    """Equivalent of EqualConv2d.forward: conv2d(x, weight * scale, bias, stride, padding)."""
    assert lane_tile % 128 == 0
    N, Cin, H, W = x_nchw.shape
    Cout, _, K, _ = weight_oihw.shape
    scale = 1.0 / math.sqrt(Cin * K * K)

    # ---- wrapper-side im2col (lane-dense patch matrix) ----------------------
    patches, H_out, W_out = _im2col_lane_major(x_nchw, K, stride, padding)
    KC, L = patches.shape                      # KC = K*K*Cin, L = N*H_out*W_out

    # Scale folded into the weight; OIHW -> (Cout, K*K*Cin) with (kh, kw, cin) cols.
    w = (weight_oihw * scale).transpose(0, 2, 3, 1).reshape(Cout, KC).astype(x_nchw.dtype)
    if bias is None:
        bias = jnp.zeros((Cout,), jnp.float32)
    b = bias.reshape(Cout, 1).astype(jnp.float32)

    # ---- alignment padding ---------------------------------------------------
    KC_pad = _round_up(KC, 8)                  # sublane-aligned contraction
    Cout_pad = _round_up(Cout, 8)              # sublane-aligned output rows
    L128 = _round_up(L, 128)                   # lane-aligned
    TL = min(lane_tile, L128)                  # lane tile per grid step
    L_pad = _round_up(L128, TL)

    patches = jnp.pad(patches, ((0, KC_pad - KC), (0, L_pad - L)))
    w = jnp.pad(w, ((0, Cout_pad - Cout), (0, KC_pad - KC)))
    b = jnp.pad(b, ((0, Cout_pad - Cout), (0, 0)))

    # ---- Pallas: pure lane-dense matmul + bias -------------------------------
    out = pl.pallas_call(
        _matmul_bias_kernel,
        out_shape=jax.ShapeDtypeStruct((Cout_pad, L_pad), x_nchw.dtype),
        grid=(L_pad // TL,),
        in_specs=[
            pl.BlockSpec((Cout_pad, KC_pad), lambda t: (0, 0)),
            pl.BlockSpec((KC_pad, TL), lambda t: (0, t)),
            pl.BlockSpec((Cout_pad, 1), lambda t: (0, 0)),
        ],
        out_specs=pl.BlockSpec((Cout_pad, TL), lambda t: (0, t)),
        compiler_params=pltpu.CompilerParams(dimension_semantics=("parallel",)),
    )(w, patches, b)

    # (Cout_pad, L_pad) -> NCHW (wrapper-side layout plumbing only).
    out = out[:Cout, :L].reshape(Cout, N, H_out, W_out)
    return jnp.transpose(out, (1, 0, 2, 3))


def _reference(x, weight, bias, stride, padding):
    Cin, K = weight.shape[1], weight.shape[2]
    scale = 1.0 / math.sqrt(Cin * K * K)
    ref = lax.conv_general_dilated(
        x, weight * scale,
        window_strides=(stride, stride),
        padding=((padding, padding), (padding, padding)),
        dimension_numbers=("NCHW", "OIHW", "NCHW"),
    )
    if bias is not None:
        ref = ref + bias.reshape(1, -1, 1, 1)
    return ref


if __name__ == "__main__":
    key = jax.random.PRNGKey(0)

    # --- check 1: module config (in=4, out=8, k=3, stride=1, padding=1, bias) ---
    k1, k2, k3, k4, k5 = jax.random.split(key, 5)
    N, Cin, H, W = 2, 4, 16, 16
    Cout, K = 8, 3
    x = jax.random.normal(k1, (N, Cin, H, W), dtype=jnp.float32)
    weight = jax.random.normal(k2, (Cout, Cin, K, K), dtype=jnp.float32)
    bias = jnp.zeros((Cout,), dtype=jnp.float32)

    out = equal_conv2d(x, weight, bias, stride=1, padding=1)
    out = jax.block_until_ready(out)
    ref = _reference(x, weight, bias, stride=1, padding=1)
    assert out.shape == (N, Cout, H, W)
    assert jnp.allclose(out, ref, atol=1e-4, rtol=1e-4), "mismatch (stride=1, padding=1)"

    # --- check 2: stride=2, padding=0, non-zero bias, odd channel counts ---------
    N2, Cin2, H2, W2 = 2, 3, 9, 9
    Cout2, K2 = 5, 3
    x2 = jax.random.normal(k3, (N2, Cin2, H2, W2), dtype=jnp.float32)
    w2 = jax.random.normal(k4, (Cout2, Cin2, K2, K2), dtype=jnp.float32)
    b2 = jax.random.normal(k5, (Cout2,), dtype=jnp.float32)

    out2 = equal_conv2d(x2, w2, b2, stride=2, padding=0)
    out2 = jax.block_until_ready(out2)
    ref2 = _reference(x2, w2, b2, stride=2, padding=0)
    assert out2.shape == ref2.shape
    assert jnp.allclose(out2, ref2, atol=1e-4, rtol=1e-4), "mismatch (stride=2, bias)"

    print("KERNEL_OK")
</pallas_src>

<mosaic_0001>
module attributes {stable_mosaic.version = 11 : i64} {
  func.func @_matmul_bias_kernel(%arg0: i32, %arg1: memref<8x40xf32, #tpu.memory_space<vmem>>, %arg2: memref<40x512xf32, #tpu.memory_space<vmem>>, %arg3: memref<8x1xf32, #tpu.memory_space<vmem>>, %arg4: memref<8x512xf32, #tpu.memory_space<vmem>>) attributes {dimension_semantics = [#tpu.dimension_semantics<parallel>], iteration_bounds = array<i64: 1>, scalar_prefetch = 0 : i64, scratch_operands = 0 : i64, tpu.core_type = #tpu.core_type<tc>, window_params = [{pipeline_mode = #tpu.pipeline_mode<synchronous>, transform_indices = @transform_0, window_bounds = array<i64: 8, 40>}, {transform_indices = @transform_1, window_bounds = array<i64: 40, 512>}, {pipeline_mode = #tpu.pipeline_mode<synchronous>, transform_indices = @transform_2, window_bounds = array<i64: 8, 1>}, {transform_indices = @transform_3, window_bounds = array<i64: 8, 512>}]} {
    %c0 = arith.constant 0 : index
    %c0_0 = arith.constant 0 : index
    %0 = vector.load %arg1[%c0, %c0_0] : memref<8x40xf32, #tpu.memory_space<vmem>>, vector<8x40xf32>
    %c0_1 = arith.constant 0 : index
    %c0_2 = arith.constant 0 : index
    %1 = vector.load %arg2[%c0_1, %c0_2] : memref<40x512xf32, #tpu.memory_space<vmem>>, vector<40x512xf32>
    %cst = arith.constant dense<0.000000e+00> : vector<8x512xf32>
    %2 = tpu.matmul %0, %1, %cst {dimension_numbers = #tpu.dot_dimension_numbers<[1], [0], [0], [1], [0, 0, 1, 1], [], []>} : vector<8x40xf32>, vector<40x512xf32>, vector<8x512xf32> -> vector<8x512xf32>
    %c0_3 = arith.constant 0 : index
    %c0_4 = arith.constant 0 : index
    %3 = vector.load %arg3[%c0_3, %c0_4] : memref<8x1xf32, #tpu.memory_space<vmem>>, vector<8x1xf32>
    %4 = vector.broadcast %3 : vector<8x1xf32> to vector<8x512xf32>
    %5 = arith.addf %2, %4 : vector<8x512xf32>
    %c0_5 = arith.constant 0 : index
    %c0_6 = arith.constant 0 : index
    %6 = vector.load %arg4[%c0_5, %c0_6] : memref<8x512xf32, #tpu.memory_space<vmem>>, vector<8x512xf32>
    tpu.vector_store %arg4[%c0_5, %c0_6], %5 {strides = array<i32>} : memref<8x512xf32, #tpu.memory_space<vmem>>, vector<8x512xf32>,
    return
  }
  func.func @transform_0(%arg0: i32) -> (i32, i32) {
    %c0_i32 = arith.constant 0 : i32
    %c0_i32_0 = arith.constant 0 : i32
    %c0_i32_1 = arith.constant 0 : i32
    return %c0_i32, %c0_i32_0 : i32, i32
  }
  func.func @transform_1(%arg0: i32) -> (i32, i32) {
    %c0_i32 = arith.constant 0 : i32
    %c0_i32_0 = arith.constant 0 : i32
    return %c0_i32, %arg0 : i32, i32
  }
  func.func @transform_2(%arg0: i32) -> (i32, i32) {
    %c0_i32 = arith.constant 0 : i32
    %c0_i32_0 = arith.constant 0 : i32
    %c0_i32_1 = arith.constant 0 : i32
    return %c0_i32, %c0_i32_0 : i32, i32
  }
  func.func @transform_3(%arg0: i32) -> (i32, i32) {
    %c0_i32 = arith.constant 0 : i32
    %c0_i32_0 = arith.constant 0 : i32
    return %c0_i32, %arg0 : i32, i32
  }
}

</mosaic_0001>

<llo_original>
// kernel: tpu_custom_call.1
$region0: #{tpu_custom_call.1}
  #allocation0 [shape = 'u32[]', space=smem, size = 0x4, offset = 0x4, fixed_abs, tag = 'smem constant byte address 0x4 - core index']
  #allocation1 [shape = 'u32[144,128]{1,0:T(1,128)}', space=vmem, size = 0x12000, scoped, tag = 'internal scratch']
  %s0 = inlined_call_operand.vmem [shape: f32[8,40], index: 0, kind: input, shape index: {}]
  %s1 = inlined_call_operand.hbm [shape: f32[40,512], index: 1, kind: input, shape index: {}]
  %s2 = inlined_call_operand.vmem [shape: f32[8,1], index: 2, kind: input, shape index: {}]
  %s3 = inlined_call_operand.hbm [shape: f32[8,512], index: 3, kind: output, shape index: {}]
  %s4 = sld [smem:[#allocation0]]
  $region26: #{tpu_custom_call.1} parent=0
    _
  %s6 = ssub.s32 1, %s4
  %s7 = scalar_select 0, %s6, %s4
  $region1: #{tpu_custom_call.1} parent=0
    #allocation2 [shape = 'u8[81920]{0}', space=vmem, size = 0x14000, scoped, tag = 'input window, operand 1, single buffered']
    #allocation3 [shape = 's32[1]{0}', space=sflag, size = 0x4, scoped, tag = 'scoped memory for tpu_custom_call.1']
    #allocation4 [shape = 's32[1]{0}', space=sflag, size = 0x4, scoped, tag = 'scoped memory for tpu_custom_call.1']
    #allocation5 [shape = 'u8[16384]{0}', space=vmem, size = 0x4000, scoped, tag = 'output window, operand 0, single buffered']
    %8 = vsyncpa [#allocation3], 0
    %9 = vsyncpa [#allocation4], 0
    // Predicated region
    $region2: #{tpu_custom_call.1} parent=1 // pred_check
      _
    $region3: #{tpu_custom_call.1} parent=1 // pred_check_branch
      %11 = sbr.rel (0) target = $region5
    $region4: #{tpu_custom_call.1} parent=1 // pred_region
      _
    $region5: #{tpu_custom_call.1} parent=1 // pred_fallthru
      _
    // Predicated region
    $region6: #{tpu_custom_call.1} parent=1 // pred_check
      _
    $region7: #{tpu_custom_call.1} parent=1 // pred_check_branch
      %13 = sbr.rel (0) target = $region9
    $region8: #{tpu_custom_call.1} parent=1 // pred_region
      %s15 = ssub.s32 2560, 2560
      %16 = vsyncadd [#allocation3], %s15
      %s17 = sshll.u32 [#allocation2], 4
      %s18 = int_to_ptr.vmem [resolvable:$true] %s17
      %23 = dma.hbm_to_vmem [thread:$0]  %s1, 2560, %s18, [#allocation3], 512, 512, 32
    $region9: #{tpu_custom_call.1} parent=1 // pred_fallthru
      _
    // Predicated region
    $region10: #{tpu_custom_call.1} parent=1 // pred_check
      _
    $region11: #{tpu_custom_call.1} parent=1 // pred_check_branch
      %25 = sbr.rel (0) target = $region13
    $region12: #{tpu_custom_call.1} parent=1 // pred_region
      _
    $region13: #{tpu_custom_call.1} parent=1 // pred_fallthru
      _
    // Predicated region
    $region14: #{tpu_custom_call.1} parent=1 // pred_check
      _
    $region15: #{tpu_custom_call.1} parent=1 // pred_check_branch
      %27 = sbr.rel (0) target = $region17
    $region16: #{tpu_custom_call.1} parent=1 // pred_region
      %28 = dma.done [#allocation3], 2560
    $region17: #{tpu_custom_call.1} parent=1 // pred_fallthru
      _
    %v29 = vld [vmem:[%s0] sm:$0xff]
    %v30 = vld [vmem:[#allocation2] sm:$0xff]
    %v31 = vld [vmem:[#allocation2 + $0x8] sm:$0xff]
    %v32 = vld [vmem:[#allocation2 + $0x10] sm:$0xff]
    %v33 = vld [vmem:[#allocation2 + $0x18] sm:$0xff]
    %v34 = vld [vmem:[#allocation2 + $0x20] sm:$0xff]
    %v35 = vld [vmem:[#allocation2 + $0x28] sm:$0xff]
    %v36 = vld [vmem:[#allocation2 + $0x30] sm:$0xff]
    %v37 = vld [vmem:[#allocation2 + $0x38] sm:$0xff]
    %v38 = vld [vmem:[#allocation2 + $0x40] sm:$0xff]
    %v39 = vld [vmem:[#allocation2 + $0x48] sm:$0xff]
    %v40 = vld [vmem:[#allocation2 + $0x50] sm:$0xff]
    %v41 = vld [vmem:[#allocation2 + $0x58] sm:$0xff]
    %v42 = vld [vmem:[#allocation2 + $0x60] sm:$0xff]
    %v43 = vld [vmem:[#allocation2 + $0x68] sm:$0xff]
    %v44 = vld [vmem:[#allocation2 + $0x70] sm:$0xff]
    %v45 = vld [vmem:[#allocation2 + $0x78] sm:$0xff]
    %v46 = vld [vmem:[#allocation2 + $0x80] sm:$0xff]
    %v47 = vld [vmem:[#allocation2 + $0x88] sm:$0xff]
    %v48 = vld [vmem:[#allocation2 + $0x90] sm:$0xff]
    %v49 = vld [vmem:[#allocation2 + $0x98] sm:$0xff]
    %v50 = vld [vmem:[%s2] sm:$0xff]
    %52 = vset.pattern.permute.xlu0 0
    %53 = vperm.xlu0 %52, %v50
    %v54 = vpop.permute.xlu0 %53
    %vm56 = vcmask 326656
    %v58 = vsel %vm56, %v29, 0
    %60 = vmatprep.subr.mxu0 %v31
    %61 = vmatpush1.msra.mxu0 %v30
    %62 = vmatprep.subr.mxu0 %v35
    %63 = vmatpush1.msra.mxu0 %v34
    %64 = vmatprep.subr.mxu0 %v39
    %65 = vmatpush1.msra.mxu0 %v38
    %66 = vmatprep.subr.mxu0 %v43
    %67 = vmatpush1.msra.mxu0 %v42
    %68 = vmatprep.subr.mxu0 %v47
    %69 = vmatpush1.msra.mxu0 %v46
    %70 = vmatprep.subr.mxu0 0.0
    %71 = vmatpush1.msra.mxu0 0.0
    %72 = vmatprep.subr.mxu0 0.0
    %73 = vmatpush1.msra.mxu0 0.0
    %74 = vmatprep.subr.mxu0 0.0
    %75 = vmatpush1.msra.mxu0 0.0
    %76 = vmatprep.subr.mxu0 0.0
    %77 = vmatpush1.msra.mxu0 0.0
    %78 = vmatprep.subr.mxu0 0.0
    %79 = vmatpush1.msra.mxu0 0.0
    %80 = vmatprep.subr.mxu0 0.0
    %81 = vmatpush1.msra.mxu0 0.0
    %82 = vmatprep.subr.mxu0 0.0
    %83 = vmatpush1.msra.mxu0 0.0
    %84 = vmatprep.subr.mxu0 0.0
    %85 = vmatpush1.msra.mxu0 0.0
    %86 = vmatprep.subr.mxu0 0.0
    %87 = vmatpush1.msra.mxu0 0.0
    %88 = vmatprep.subr.mxu0 0.0
    %89 = vmatpush1.msra.mxu0 0.0
    %90 = vmatprep.subr.mxu0 0.0
    %91 = vmatpush1.msra.mxu0 0.0
    %92 = vmatprep.subr.mxu0 0.0
    %93 = vmatpush1.msra.mxu0 0.0
    %94 = vmatprep.subr.mxu0 0.0
    %95 = vmatpush1.msra.mxu0 0.0
    %96 = vmatprep.subr.mxu0 0.0
    %97 = vmatpush1.msra.mxu0 0.0
    %98 = vmatprep.subr.mxu0 0.0
    %99 = vmatpush1.msra.mxu0 0.0
    %100 = vmatprep.subr.mxu0 0.0
    %101 = vmatpush1.msra.mxu0 0.0
    %102 = vmatprep.subr.mxu0 0.0
    %103 = vmatpush1.msra.mxu0 0.0
    %104 = vmatprep.subr.mxu0 0.0
    %105 = vmatpush1.msra.mxu0 0.0
    %106 = vmatprep.subr.mxu0 0.0
    %107 = vmatpush1.msra.mxu0 0.0
    %108 = vmatprep.subr.mxu0 0.0
    %109 = vmatpush1.msra.mxu0 0.0
    %110 = vmatprep.subr.mxu0 0.0
    %111 = vmatpush1.msra.mxu0 0.0
    %112 = vmatprep.subr.mxu0 0.0
    %113 = vmatpush1.msra.mxu0 0.0
    %114 = vmatprep.subr.mxu0 0.0
    %115 = vmatpush1.msra.mxu0 0.0
    %116 = vmatprep.subr.mxu0 0.0
    %117 = vmatpush1.msra.mxu0 0.0
    %118 = vmatprep.subr.mxu0 0.0
    %119 = vmatpush1.msra.mxu0 0.0
    %120 = vmatprep.subr.mxu0 0.0
    %121 = vmatpush1.msra.mxu0 0.0
    %122 = vmatprep.subr.mxu0 0.0
    %123 = vmatpush1.msra.mxu0 0.0
    %124 = vmatprep.mubr.f32.mxu0 0.0
    %125 = vmatmul.mubr.f32.gmra.mrb[0].mxu0 %v58
    %v126 = vpop.f32.mrb[0].mxu0
    %v127 = vadd.f32 %v54, %v126
    %v128 = vpop.f32.mrb[0].mxu0
    %v129 = vadd.f32 %v54, %v128
    %130 = vdwg.mxu0
    %131 = vmatprep.subr.mxu0 %v33
    %132 = vmatpush1.msra.mxu0 %v32
    %133 = vmatprep.subr.mxu0 %v37
    %134 = vmatpush1.msra.mxu0 %v36
    %135 = vmatprep.subr.mxu0 %v41
    %136 = vmatpush1.msra.mxu0 %v40
    %137 = vmatprep.subr.mxu0 %v45
    %138 = vmatpush1.msra.mxu0 %v44
    %139 = vmatprep.subr.mxu0 %v49
    %140 = vmatpush1.msra.mxu0 %v48
    %141 = vmatprep.subr.mxu0 0.0
    %142 = vmatpush1.msra.mxu0 0.0
    %143 = vmatprep.subr.mxu0 0.0
    %144 = vmatpush1.msra.mxu0 0.0
    %145 = vmatprep.subr.mxu0 0.0
    %146 = vmatpush1.msra.mxu0 0.0
    %147 = vmatprep.subr.mxu0 0.0
    %148 = vmatpush1.msra.mxu0 0.0
    %149 = vmatprep.subr.mxu0 0.0
    %150 = vmatpush1.msra.mxu0 0.0
    %151 = vmatprep.subr.mxu0 0.0
    %152 = vmatpush1.msra.mxu0 0.0
    %153 = vmatprep.subr.mxu0 0.0
    %154 = vmatpush1.msra.mxu0 0.0
    %155 = vmatprep.subr.mxu0 0.0
    %156 = vmatpush1.msra.mxu0 0.0
    %157 = vmatprep.subr.mxu0 0.0
    %158 = vmatpush1.msra.mxu0 0.0
    %159 = vmatprep.subr.mxu0 0.0
    %160 = vmatpush1.msra.mxu0 0.0
    %161 = vmatprep.subr.mxu0 0.0
    %162 = vmatpush1.msra.mxu0 0.0
    %163 = vmatprep.subr.mxu0 0.0
    %164 = vmatpush1.msra.mxu0 0.0
    %165 = vmatprep.subr.mxu0 0.0
    %166 = vmatpush1.msra.mxu0 0.0
    %167 = vmatprep.subr.mxu0 0.0
    %168 = vmatpush1.msra.mxu0 0.0
    %169 = vmatprep.subr.mxu0 0.0
    %170 = vmatpush1.msra.mxu0 0.0
    %171 = vmatprep.subr.mxu0 0.0
    %172 = vmatpush1.msra.mxu0 0.0
    %173 = vmatprep.subr.mxu0 0.0
    %174 = vmatpush1.msra.mxu0 0.0
    %175 = vmatprep.subr.mxu0 0.0
    %176 = vmatpush1.msra.mxu0 0.0
    %177 = vmatprep.subr.mxu0 0.0
    %178 = vmatpush1.msra.mxu0 0.0
    %179 = vmatprep.subr.mxu0 0.0
    %180 = vmatpush1.msra.mxu0 0.0
    %181 = vmatprep.subr.mxu0 0.0
    %182 = vmatpush1.msra.mxu0 0.0
    %183 = vmatprep.subr.mxu0 0.0
    %184 = vmatpush1.msra.mxu0 0.0
    %185 = vmatprep.subr.mxu0 0.0
    %186 = vmatpush1.msra.mxu0 0.0
    %187 = vmatprep.subr.mxu0 0.0
    %188 = vmatpush1.msra.mxu0 0.0
    %189 = vmatprep.subr.mxu0 0.0
    %190 = vmatpush1.msra.mxu0 0.0
    %191 = vmatprep.subr.mxu0 0.0
    %192 = vmatpush1.msra.mxu0 0.0
    %193 = vmatprep.subr.mxu0 0.0
    %194 = vmatpush1.msra.mxu0 0.0
    %195 = vmatprep.mubr.f32.mxu0 0.0
    %196 = vmatmul.mubr.f32.gmra.mrb[0].mxu0 %v58
    %v197 = vpop.f32.mrb[0].mxu0
    %v198 = vadd.f32 %v54, %v197
    %v199 = vpop.f32.mrb[0].mxu0
    %v200 = vadd.f32 %v54, %v199
    %201 = vdwg.mxu0
    %202 = vst [vmem:[#allocation5] sm:$0xff] %v127
    %203 = vst [vmem:[#allocation5 + $0x8] sm:$0xff] %v129
    %204 = vst [vmem:[#allocation5 + $0x10] sm:$0xff] %v198
    %205 = vst [vmem:[#allocation5 + $0x18] sm:$0xff] %v200
    // Predicated region
    $region18: #{tpu_custom_call.1} parent=1 // pred_check
      _
    $region19: #{tpu_custom_call.1} parent=1 // pred_check_branch
      %207 = sbr.rel (0) target = $region21
    $region20: #{tpu_custom_call.1} parent=1 // pred_region
      %s209 = ssub.s32 512, 512
      %210 = vsyncadd [#allocation4], %s209
      %s212 = sshll.u32 [#allocation5], 4
      %s213 = int_to_ptr.vmem [resolvable:$true] %s212
      %215 = dma.vmem_to_hbm [thread:$0]  %s213, 512, %s3, [#allocation4]
    $region21: #{tpu_custom_call.1} parent=1 // pred_fallthru
      _
    // Predicated region
    $region22: #{tpu_custom_call.1} parent=1 // pred_check
      _
    $region23: #{tpu_custom_call.1} parent=1 // pred_check_branch
      %217 = sbr.rel (0) target = $region25
    $region24: #{tpu_custom_call.1} parent=1 // pred_region
      %218 = dma.done [#allocation4], 512
    $region25: #{tpu_custom_call.1} parent=1 // pred_fallthru
      _
    %219 = vsyncpa [#allocation3], 1
    %220 = vsyncpa [#allocation4], 1

</llo_original>
